<compile_context>
chip_gen: v6e
topology: v6e:2x2x1
jax: 0.10.0
libtpu: 0.0.40
codegen_flags: <defaults>
</compile_context>

<pallas_src>
import functools

import jax
import jax.numpy as jnp
from jax.experimental import pallas as pl
from jax.experimental.pallas import tpu as pltpu


_VMEM_LIMIT = 48 * 1024 * 1024   # < v7x 64 MiB physical, >> default scope on all gens


# ---------------------------------------------------------------------------
# helpers
# ---------------------------------------------------------------------------

def _round_up(a: int, m: int) -> int:
    return -(-a // m) * m


def _pick_hw_tile(c: int, hw: int, itemsize: int, target_bytes: int,
                  max_lanes: int = 512 * 128) -> int:
    """Pick a lane-multiple HW tile of ~target_bytes per streamed operand."""
    per_lane = max(1, c * itemsize)
    t = (target_bytes // per_lane) // 128 * 128
    t = max(128, min(t, max_lanes))
    return min(t, _round_up(hw, 128))


def _erf(x):
    # Abramowitz & Stegun 7.1.26 (|err| <= 1.5e-7).  exp() runs on the EUP and
    # the polynomial on the VPU; both have full slack in an HBM-bound kernel.
    p = 0.3275911
    a1, a2, a3, a4, a5 = (0.254829592, -0.284496736, 1.421413741,
                          -1.453152027, 1.061405429)
    ax = jnp.abs(x)
    t = 1.0 / (1.0 + p * ax)
    poly = ((((a5 * t + a4) * t + a3) * t + a2) * t + a1) * t
    y = 1.0 - poly * jnp.exp(-ax * ax)
    return jnp.where(x >= 0, y, -y)


def _gelu_exact(x):
    return 0.5 * x * (1.0 + _erf(x * 0.7071067811865476))


# ---------------------------------------------------------------------------
# kernel 1: fused 1x1 conv + exact GELU + streaming avg/max pool
# ---------------------------------------------------------------------------

def _conv_gelu_pool_kernel(x_ref, w_ref, b_ref, t_ref, pooled_ref,
                           sum_acc, max_acc, *, hw_true, hw_tile, needs_mask):
    tt = pl.program_id(1)
    last = pl.num_programs(1) - 1

    @pl.when(tt == 0)
    def _init():
        sum_acc[...] = jnp.zeros_like(sum_acc)
        max_acc[...] = jnp.full_like(max_acc, -jnp.inf)

    c_out = w_ref.shape[0]
    x = x_ref[0].astype(jnp.float32)                        # (C, t_hw)
    w = w_ref[...].astype(jnp.float32)                      # (C, C)
    b = b_ref[...].astype(jnp.float32)                      # (C, 1)
    y = _gelu_exact(jnp.dot(w, x, preferred_element_type=jnp.float32) + b)
    t_ref[0] = y.astype(t_ref.dtype)

    def _accumulate_full():
        sum_acc[...] += jnp.sum(y, axis=-1, keepdims=True)
        max_acc[...] = jnp.maximum(max_acc[...],
                                   jnp.max(y, axis=-1, keepdims=True))

    if needs_mask:
        # Only the final HW tile can contain out-of-range lanes; build the
        # validity mask (and pay the vcmp/vsel) only there.
        @pl.when(tt != last)
        def _full():
            _accumulate_full()

        @pl.when(tt == last)
        def _ragged():
            lane = jax.lax.broadcasted_iota(jnp.int32, (1, y.shape[-1]), 1)
            valid = (tt * hw_tile + lane) < hw_true
            sum_acc[...] += jnp.sum(jnp.where(valid, y, 0.0),
                                    axis=-1, keepdims=True)
            max_acc[...] = jnp.maximum(
                max_acc[...],
                jnp.max(jnp.where(valid, y, -jnp.inf), axis=-1, keepdims=True))
    else:
        _accumulate_full()

    @pl.when(tt == last)
    def _finalize():
        col = jax.lax.broadcasted_iota(jnp.int32, (c_out, 2), 1)
        avg = sum_acc[...] * (1.0 / hw_true)                 # true-HW average
        pooled = jnp.where(col == 0, avg, max_acc[...])      # (C, 2)
        pooled_ref[0] = pooled.astype(pooled_ref.dtype)


def conv_gelu_pool(x_flat, w, b, *, hw_tile=None):
    """x_flat: (B,C,HW); w: (C,C); b: (C,). Returns (t (B,C,HW), pooled (B,C,2))."""
    B, C, HW = x_flat.shape
    itemsize = jnp.dtype(x_flat.dtype).itemsize
    if hw_tile is not None:
        t_hw = min(_round_up(int(hw_tile), 128), _round_up(HW, 128))
    else:
        t_hw = _pick_hw_tile(C, HW, itemsize, target_bytes=4 * 1024 * 1024)
    n_t = pl.cdiv(HW, t_hw)
    needs_mask = (HW % t_hw) != 0

    kernel = functools.partial(_conv_gelu_pool_kernel, hw_true=HW,
                               hw_tile=t_hw, needs_mask=needs_mask)

    cost = pl.CostEstimate(
        flops=2 * B * C * C * HW + 30 * B * C * HW,
        transcendentals=B * C * HW,
        bytes_accessed=2 * B * C * HW * itemsize + (C * C + C) * 4 + B * C * 8)

    # TODO(synk): for B=1 on v7x, split the HW reduction over the 2 TensorCores
    # (CORE_PARALLEL + per-core partial accumulators) instead of batch-only.
    t_out, pooled = pl.pallas_call(
        kernel,
        out_shape=(jax.ShapeDtypeStruct((B, C, HW), x_flat.dtype),
                   jax.ShapeDtypeStruct((B, C, 2), jnp.float32)),
        grid_spec=pltpu.PrefetchScalarGridSpec(
            num_scalar_prefetch=0,
            grid=(B, n_t),                            # B parallel, HW reduction last
            in_specs=[
                pl.BlockSpec((1, C, t_hw), lambda bb, tt: (bb, 0, tt)),
                pl.BlockSpec((C, C), lambda bb, tt: (0, 0)),
                pl.BlockSpec((C, 1), lambda bb, tt: (0, 0)),
            ],
            out_specs=[
                pl.BlockSpec((1, C, t_hw), lambda bb, tt: (bb, 0, tt)),
                pl.BlockSpec((1, C, 2), lambda bb, tt: (bb, 0, 0)),
            ],
            scratch_shapes=[pltpu.VMEM((C, 1), jnp.float32),   # running sum
                            pltpu.VMEM((C, 1), jnp.float32)],  # running max
        ),
        compiler_params=pltpu.CompilerParams(
            dimension_semantics=("parallel", "arbitrary"),
            vmem_limit_bytes=_VMEM_LIMIT),
        cost_estimate=cost,
    )(x_flat, w, b.reshape(C, 1))
    return t_out, pooled


# ---------------------------------------------------------------------------
# kernel 2: fused back-to-back 1x1 convs:  out = W @ ((W @ x_sum + b) * inp) + b
# ---------------------------------------------------------------------------

def _double_conv_mul_kernel(xs_ref, inp_ref, w_ref, b_ref, o_ref):
    w = w_ref[...].astype(jnp.float32)                       # (C, C)
    b = b_ref[...].astype(jnp.float32)                       # (C, 1)
    y1 = jnp.dot(w, xs_ref[0].astype(jnp.float32),
                 preferred_element_type=jnp.float32) + b     # spatial_att tile
    y2 = jnp.dot(w, y1 * inp_ref[0].astype(jnp.float32),
                 preferred_element_type=jnp.float32) + b
    o_ref[0] = y2.astype(o_ref.dtype)


def double_conv_mul(x_sum_flat, inp_flat, w, b, *, hw_tile=None):
    """x_sum_flat, inp_flat: (B,C,HW); w: (C,C); b: (C,). Returns (B,C,HW)."""
    B, C, HW = x_sum_flat.shape
    itemsize = jnp.dtype(x_sum_flat.dtype).itemsize
    if hw_tile is not None:
        t_hw = min(_round_up(int(hw_tile), 128), _round_up(HW, 128))
    else:
        t_hw = _pick_hw_tile(C, HW, itemsize, target_bytes=3 * 1024 * 1024)
    n_t = pl.cdiv(HW, t_hw)

    cost = pl.CostEstimate(
        flops=4 * B * C * C * HW + 2 * B * C * HW,
        transcendentals=0,
        bytes_accessed=3 * B * C * HW * itemsize + (C * C + C) * 4)

    out = pl.pallas_call(
        _double_conv_mul_kernel,
        out_shape=jax.ShapeDtypeStruct((B, C, HW), x_sum_flat.dtype),
        grid_spec=pltpu.PrefetchScalarGridSpec(
            num_scalar_prefetch=0,
            grid=(B, n_t),
            in_specs=[
                pl.BlockSpec((1, C, t_hw), lambda bb, tt: (bb, 0, tt)),
                pl.BlockSpec((1, C, t_hw), lambda bb, tt: (bb, 0, tt)),
                pl.BlockSpec((C, C), lambda bb, tt: (0, 0)),
                pl.BlockSpec((C, 1), lambda bb, tt: (0, 0)),
            ],
            out_specs=pl.BlockSpec((1, C, t_hw), lambda bb, tt: (bb, 0, tt)),
        ),
        compiler_params=pltpu.CompilerParams(
            dimension_semantics=("parallel", "parallel"),
            vmem_limit_bytes=_VMEM_LIMIT),
        cost_estimate=cost,
    )(x_sum_flat, inp_flat, w, b.reshape(C, 1))
    return out


# ---------------------------------------------------------------------------
# depthwise convs (XLA) and the full CPCAAttention forward
# ---------------------------------------------------------------------------

def _depthwise_conv(x, w, b):
    """Grouped (depthwise) conv: x (B,C,H,W), w (C,1,kh,kw), b (C,)."""
    c = x.shape[1]
    kh, kw = w.shape[2], w.shape[3]
    pad = ((kh // 2, kh // 2), (kw // 2, kw // 2))
    y = jax.lax.conv_general_dilated(
        x, w, window_strides=(1, 1), padding=pad,
        dimension_numbers=('NCHW', 'OIHW', 'NCHW'),
        feature_group_count=c)
    return y + b.reshape(1, c, 1, 1)


def cpca_attention(x, p, *, hw_tile=None):
    """CPCAAttention.forward with fused Pallas kernels for the 1x1-conv stages."""
    B, C, H, W = x.shape
    HW = H * W
    hp = jax.lax.Precision.HIGHEST

    # 1) fused: conv1x1 -> exact GELU -> avg/max pool (single pass over x / t).
    t_flat, pooled = conv_gelu_pool(x.reshape(B, C, HW), p['conv_w'], p['conv_b'],
                                    hw_tile=hw_tile)

    # 2) tiny 2-column channel-attention MLP in XLA (degenerate MXU shape).
    h = jax.nn.relu(jnp.einsum('ic,bcn->bin', p['ca_w1'], pooled, precision=hp)
                    + p['ca_b1'][None, :, None])
    o = jnp.einsum('ci,bin->bcn', p['ca_w2'], h, precision=hp) \
        + p['ca_b2'][None, :, None]
    ca = jnp.sum(jax.nn.sigmoid(o), axis=-1)                 # (B, C)

    inp_flat = (ca[:, :, None] * t_flat).astype(x.dtype)     # (B, C, HW)
    inp = inp_flat.reshape(B, C, H, W)

    # 3) depthwise section.
    # TODO(synk): the grouped depthwise 5x5 / 1xK / Kx1 convs stay in XLA; a
    # halo-tiled Pallas kernel reading x_init once and writing x_sum once is
    # the biggest remaining whole-op win but is left out of this revision.
    x_init = _depthwise_conv(inp, p['dw5x5_w'], p['dw5x5_b'])
    x_1 = _depthwise_conv(_depthwise_conv(x_init, p['dw1x7_w'], p['dw1x7_b']),
                          p['dw7x1_w'], p['dw7x1_b'])
    x_2 = _depthwise_conv(_depthwise_conv(x_init, p['dw1x11_w'], p['dw1x11_b']),
                          p['dw11x1_w'], p['dw11x1_b'])
    x_3 = _depthwise_conv(_depthwise_conv(x_init, p['dw1x21_w'], p['dw1x21_b']),
                          p['dw21x1_w'], p['dw21x1_b'])
    x_sum = x_1 + x_2 + x_3 + x_init

    # 4) fused final: out = conv(conv(x_sum) * inp)  (spatial_att stays in VMEM).
    out_flat = double_conv_mul(x_sum.reshape(B, C, HW), inp_flat,
                               p['conv_w'], p['conv_b'], hw_tile=hw_tile)
    return out_flat.reshape(B, C, H, W)


# ---------------------------------------------------------------------------
# pure-JAX reference of the PyTorch forward
# ---------------------------------------------------------------------------

def cpca_attention_ref(x, p):
    hp = jax.lax.Precision.HIGHEST
    B, C = x.shape[0], x.shape[1]

    def conv1x1_ref(v):
        y = jnp.einsum('oc,bchw->bohw', p['conv_w'], v, precision=hp)
        return y + p['conv_b'].reshape(1, -1, 1, 1)

    t = jax.nn.gelu(conv1x1_ref(x), approximate=False)       # nn.GELU() = exact

    avg = jnp.mean(t, axis=(2, 3))
    mx = jnp.max(t, axis=(2, 3))

    def branch(v):
        h = jnp.maximum(jnp.dot(v, p['ca_w1'].T, precision=hp) + p['ca_b1'], 0.0)
        return jax.nn.sigmoid(jnp.dot(h, p['ca_w2'].T, precision=hp) + p['ca_b2'])

    ca = (branch(avg) + branch(mx)).reshape(B, C, 1, 1)
    inp = ca * t

    x_init = _depthwise_conv(inp, p['dw5x5_w'], p['dw5x5_b'])
    x_1 = _depthwise_conv(_depthwise_conv(x_init, p['dw1x7_w'], p['dw1x7_b']),
                          p['dw7x1_w'], p['dw7x1_b'])
    x_2 = _depthwise_conv(_depthwise_conv(x_init, p['dw1x11_w'], p['dw1x11_b']),
                          p['dw11x1_w'], p['dw11x1_b'])
    x_3 = _depthwise_conv(_depthwise_conv(x_init, p['dw1x21_w'], p['dw1x21_b']),
                          p['dw21x1_w'], p['dw21x1_b'])
    x_sum = x_1 + x_2 + x_3 + x_init

    spatial_att = conv1x1_ref(x_sum)
    return conv1x1_ref(spatial_att * inp)


if __name__ == "__main__":
    C = 16
    REDUCE = 4
    I = C // REDUCE

    key = jax.random.PRNGKey(0)
    keys = jax.random.split(key, 22)

    def rnd(k, shape, scale):
        return jax.random.normal(k, shape, dtype=jnp.float32) * scale

    p = dict(
        conv_w=rnd(keys[1], (C, C), 0.2),   conv_b=rnd(keys[2], (C,), 0.1),
        ca_w1=rnd(keys[3], (I, C), 0.2),    ca_b1=rnd(keys[4], (I,), 0.1),
        ca_w2=rnd(keys[5], (C, I), 0.2),    ca_b2=rnd(keys[6], (C,), 0.1),
        dw5x5_w=rnd(keys[7], (C, 1, 5, 5), 0.1),    dw5x5_b=rnd(keys[8], (C,), 0.1),
        dw1x7_w=rnd(keys[9], (C, 1, 1, 7), 0.1),    dw1x7_b=rnd(keys[10], (C,), 0.1),
        dw7x1_w=rnd(keys[11], (C, 1, 7, 1), 0.1),   dw7x1_b=rnd(keys[12], (C,), 0.1),
        dw1x11_w=rnd(keys[13], (C, 1, 1, 11), 0.1), dw1x11_b=rnd(keys[14], (C,), 0.1),
        dw11x1_w=rnd(keys[15], (C, 1, 11, 1), 0.1), dw11x1_b=rnd(keys[16], (C,), 0.1),
        dw1x21_w=rnd(keys[17], (C, 1, 1, 21), 0.1), dw1x21_b=rnd(keys[18], (C,), 0.1),
        dw21x1_w=rnd(keys[19], (C, 1, 21, 1), 0.1), dw21x1_b=rnd(keys[20], (C,), 0.1),
    )

    # (B, H, W, hw_tile) cases:
    #  - 16x16, tile 128  -> 2 full HW tiles: exercises init/accumulate/finalize
    #  - 16x16, auto tile -> single-tile fast path
    #  - 15x15, tile 128  -> ragged last tile: exercises in-kernel masking and
    #                        partial-block reads/writes (no host-side padding)
    cases = [(2, 16, 16, 128), (2, 16, 16, None), (2, 15, 15, 128)]
    for (B, H, W, tile) in cases:
        x = jax.random.normal(keys[0], (B, C, H, W), dtype=jnp.float32)
        out = jax.block_until_ready(cpca_attention(x, p, hw_tile=tile))
        ref = cpca_attention_ref(x, p)
        assert out.shape == (B, C, H, W), out.shape
        err = float(jnp.max(jnp.abs(out - ref)))
        assert err < 2e-3, f"case {(B, H, W, tile)}: max abs err {err}"

    print("KERNEL_OK")
</pallas_src>

<mosaic_0001>
module attributes {stable_mosaic.version = 11 : i64} {
  func.func @_conv_gelu_pool_kernel(%arg0: i32, %arg1: i32, %arg2: memref<1x16x128xf32, #tpu.memory_space<vmem>>, %arg3: memref<16x16xf32, #tpu.memory_space<vmem>>, %arg4: memref<16x1xf32, #tpu.memory_space<vmem>>, %arg5: memref<1x16x128xf32, #tpu.memory_space<vmem>>, %arg6: memref<1x16x2xf32, #tpu.memory_space<vmem>>, %arg7: memref<16x1xf32, #tpu.memory_space<vmem>>, %arg8: memref<16x1xf32, #tpu.memory_space<vmem>>) attributes {dimension_semantics = [#tpu.dimension_semantics<parallel>, #tpu.dimension_semantics<arbitrary>], iteration_bounds = array<i64: 2, 2>, scalar_prefetch = 0 : i64, scratch_operands = 2 : i64, tpu.core_type = #tpu.core_type<tc>, window_params = [{transform_indices = @transform_0, window_bounds = array<i64: 1, 16, 128>}, {pipeline_mode = #tpu.pipeline_mode<synchronous>, transform_indices = @transform_1, window_bounds = array<i64: 16, 16>}, {pipeline_mode = #tpu.pipeline_mode<synchronous>, transform_indices = @transform_2, window_bounds = array<i64: 16, 1>}, {transform_indices = @transform_3, window_bounds = array<i64: 1, 16, 128>}, {transform_indices = @transform_4, window_bounds = array<i64: 1, 16, 2>}]} {
    %c0_i32 = arith.constant 0 : i32
    %0 = arith.cmpi eq, %arg1, %c0_i32 : i32
    %1 = arith.extui %0 : i1 to i32
    %c0_i32_0 = arith.constant 0 : i32
    %2 = arith.cmpi ne, %1, %c0_i32_0 : i32
    scf.if %2 {
      %cst_36 = arith.constant 0.000000e+00 : f32
      %66 = vector.broadcast %cst_36 : f32 to vector<16x1xf32>
      %c0_37 = arith.constant 0 : index
      %c0_38 = arith.constant 0 : index
      %67 = vector.load %arg7[%c0_37, %c0_38] : memref<16x1xf32, #tpu.memory_space<vmem>>, vector<16x1xf32>
      tpu.vector_store %arg7[%c0_37, %c0_38], %66 {strides = array<i32>} : memref<16x1xf32, #tpu.memory_space<vmem>>, vector<16x1xf32>,
      %cst_39 = arith.constant 0xFF800000 : f32
      %68 = vector.broadcast %cst_39 : f32 to vector<16x1xf32>
      %c0_40 = arith.constant 0 : index
      %c0_41 = arith.constant 0 : index
      %69 = vector.load %arg8[%c0_40, %c0_41] : memref<16x1xf32, #tpu.memory_space<vmem>>, vector<16x1xf32>
      tpu.vector_store %arg8[%c0_40, %c0_41], %68 {strides = array<i32>} : memref<16x1xf32, #tpu.memory_space<vmem>>, vector<16x1xf32>,
    } else {
    }
    %c0 = arith.constant 0 : index
    %c0_1 = arith.constant 0 : index
    %c0_2 = arith.constant 0 : index
    %3 = vector.load %arg2[%c0, %c0_1, %c0_2] : memref<1x16x128xf32, #tpu.memory_space<vmem>>, vector<1x16x128xf32>
    %4 = vector.shape_cast %3 : vector<1x16x128xf32> to vector<16x128xf32>
    %c0_3 = arith.constant 0 : index
    %c0_4 = arith.constant 0 : index
    %5 = vector.load %arg3[%c0_3, %c0_4] : memref<16x16xf32, #tpu.memory_space<vmem>>, vector<16x16xf32>
    %c0_5 = arith.constant 0 : index
    %c0_6 = arith.constant 0 : index
    %6 = vector.load %arg4[%c0_5, %c0_6] : memref<16x1xf32, #tpu.memory_space<vmem>>, vector<16x1xf32>
    %cst = arith.constant dense<0.000000e+00> : vector<16x128xf32>
    %7 = tpu.matmul %5, %4, %cst {dimension_numbers = #tpu.dot_dimension_numbers<[1], [0], [0], [1], [0, 0, 1, 1], [], []>} : vector<16x16xf32>, vector<16x128xf32>, vector<16x128xf32> -> vector<16x128xf32>
    %8 = vector.broadcast %6 : vector<16x1xf32> to vector<16x128xf32>
    %9 = arith.addf %7, %8 : vector<16x128xf32>
    %cst_7 = arith.constant 5.000000e-01 : f32
    %10 = vector.broadcast %cst_7 : f32 to vector<16x128xf32>
    %11 = arith.mulf %10, %9 : vector<16x128xf32>
    %cst_8 = arith.constant 0.707106769 : f32
    %12 = vector.broadcast %cst_8 : f32 to vector<16x128xf32>
    %13 = arith.mulf %9, %12 : vector<16x128xf32>
    %14 = math.absf %13 : vector<16x128xf32>
    %cst_9 = arith.constant 0.327591091 : f32
    %15 = vector.broadcast %cst_9 : f32 to vector<16x128xf32>
    %16 = arith.mulf %15, %14 : vector<16x128xf32>
    %cst_10 = arith.constant 1.000000e+00 : f32
    %17 = vector.broadcast %cst_10 : f32 to vector<16x128xf32>
    %18 = arith.addf %17, %16 : vector<16x128xf32>
    %cst_11 = arith.constant 1.000000e+00 : f32
    %19 = vector.broadcast %cst_11 : f32 to vector<16x128xf32>
    %20 = arith.divf %19, %18 : vector<16x128xf32>
    %cst_12 = arith.constant 1.06140542 : f32
    %21 = vector.broadcast %cst_12 : f32 to vector<16x128xf32>
    %22 = arith.mulf %21, %20 : vector<16x128xf32>
    %cst_13 = arith.constant -1.45315206 : f32
    %23 = vector.broadcast %cst_13 : f32 to vector<16x128xf32>
    %24 = arith.addf %22, %23 : vector<16x128xf32>
    %25 = arith.mulf %24, %20 : vector<16x128xf32>
    %cst_14 = arith.constant 1.42141378 : f32
    %26 = vector.broadcast %cst_14 : f32 to vector<16x128xf32>
    %27 = arith.addf %25, %26 : vector<16x128xf32>
    %28 = arith.mulf %27, %20 : vector<16x128xf32>
    %cst_15 = arith.constant -0.284496725 : f32
    %29 = vector.broadcast %cst_15 : f32 to vector<16x128xf32>
    %30 = arith.addf %28, %29 : vector<16x128xf32>
    %31 = arith.mulf %30, %20 : vector<16x128xf32>
    %cst_16 = arith.constant 0.254829586 : f32
    %32 = vector.broadcast %cst_16 : f32 to vector<16x128xf32>
    %33 = arith.addf %31, %32 : vector<16x128xf32>
    %34 = arith.mulf %33, %20 : vector<16x128xf32>
    %cst_17 = arith.constant 0.000000e+00 : f32
    %35 = vector.broadcast %cst_17 : f32 to vector<16x128xf32>
    %36 = arith.subf %35, %14 : vector<16x128xf32>
    %37 = arith.mulf %36, %14 : vector<16x128xf32>
    %38 = math.exp %37 : vector<16x128xf32>
    %39 = arith.mulf %34, %38 : vector<16x128xf32>
    %cst_18 = arith.constant 1.000000e+00 : f32
    %40 = vector.broadcast %cst_18 : f32 to vector<16x128xf32>
    %41 = arith.subf %40, %39 : vector<16x128xf32>
    %cst_19 = arith.constant 0.000000e+00 : f32
    %42 = vector.broadcast %cst_19 : f32 to vector<16x128xf32>
    %43 = arith.cmpf oge, %13, %42 : vector<16x128xf32>
    %cst_20 = arith.constant 0.000000e+00 : f32
    %44 = vector.broadcast %cst_20 : f32 to vector<16x128xf32>
    %45 = arith.subf %44, %41 : vector<16x128xf32>
    %46 = arith.select %43, %41, %45 : vector<16x128xi1>, vector<16x128xf32>
    %cst_21 = arith.constant 1.000000e+00 : f32
    %47 = vector.broadcast %cst_21 : f32 to vector<16x128xf32>
    %48 = arith.addf %47, %46 : vector<16x128xf32>
    %49 = arith.mulf %11, %48 : vector<16x128xf32>
    %c0_22 = arith.constant 0 : index
    %c0_23 = arith.constant 0 : index
    %c0_24 = arith.constant 0 : index
    %50 = vector.load %arg5[%c0_22, %c0_23, %c0_24] : memref<1x16x128xf32, #tpu.memory_space<vmem>>, vector<1x16x128xf32>
    %51 = vector.shape_cast %50 : vector<1x16x128xf32> to vector<16x128xf32>
    %52 = vector.shape_cast %49 : vector<16x128xf32> to vector<1x16x128xf32>
    tpu.vector_store %arg5[%c0_22, %c0_23, %c0_24], %52 {strides = array<i32>} : memref<1x16x128xf32, #tpu.memory_space<vmem>>, vector<1x16x128xf32>,
    %c0_25 = arith.constant 0 : index
    %c0_26 = arith.constant 0 : index
    %53 = vector.load %arg7[%c0_25, %c0_26] : memref<16x1xf32, #tpu.memory_space<vmem>>, vector<16x1xf32>
    %cst_27 = arith.constant dense<0.000000e+00> : vector<16xf32>
    %54 = vector.multi_reduction <add>, %49, %cst_27 [1] : vector<16x128xf32> to vector<16xf32>
    %55 = vector.shape_cast %54 : vector<16xf32> to vector<16x1xf32>
    %56 = arith.addf %53, %55 : vector<16x1xf32>
    %c0_28 = arith.constant 0 : index
    %c0_29 = arith.constant 0 : index
    %57 = vector.load %arg7[%c0_28, %c0_29] : memref<16x1xf32, #tpu.memory_space<vmem>>, vector<16x1xf32>
    tpu.vector_store %arg7[%c0_28, %c0_29], %56 {strides = array<i32>} : memref<16x1xf32, #tpu.memory_space<vmem>>, vector<16x1xf32>,
    %c0_30 = arith.constant 0 : index
    %c0_31 = arith.constant 0 : index
    %58 = vector.load %arg8[%c0_30, %c0_31] : memref<16x1xf32, #tpu.memory_space<vmem>>, vector<16x1xf32>
    %cst_32 = arith.constant dense<0xFF800000> : vector<16xf32>
    %59 = vector.multi_reduction <maximumf>, %49, %cst_32 [1] : vector<16x128xf32> to vector<16xf32>
    %60 = vector.shape_cast %59 : vector<16xf32> to vector<16x1xf32>
    %61 = arith.maximumf %58, %60 : vector<16x1xf32>
    %c0_33 = arith.constant 0 : index
    %c0_34 = arith.constant 0 : index
    %62 = vector.load %arg8[%c0_33, %c0_34] : memref<16x1xf32, #tpu.memory_space<vmem>>, vector<16x1xf32>
    tpu.vector_store %arg8[%c0_33, %c0_34], %61 {strides = array<i32>} : memref<16x1xf32, #tpu.memory_space<vmem>>, vector<16x1xf32>,
    %c1_i32 = arith.constant 1 : i32
    %63 = arith.cmpi eq, %arg1, %c1_i32 : i32
    %64 = arith.extui %63 : i1 to i32
    %c0_i32_35 = arith.constant 0 : i32
    %65 = arith.cmpi ne, %64, %c0_i32_35 : i32
    scf.if %65 {
      %66 = tpu.iota {dimensions = array<i32: 1>} : vector<16x2xi32>
      %c0_36 = arith.constant 0 : index
      %c0_37 = arith.constant 0 : index
      %67 = vector.load %arg7[%c0_36, %c0_37] : memref<16x1xf32, #tpu.memory_space<vmem>>, vector<16x1xf32>
      %cst_38 = arith.constant 3.906250e-03 : f32
      %68 = vector.broadcast %cst_38 : f32 to vector<16x1xf32>
      %69 = arith.mulf %67, %68 : vector<16x1xf32>
      %c0_i32_39 = arith.constant 0 : i32
      %70 = vector.broadcast %c0_i32_39 : i32 to vector<16x2xi32>
      %71 = arith.cmpi eq, %66, %70 : vector<16x2xi32>
      %c0_40 = arith.constant 0 : index
      %c0_41 = arith.constant 0 : index
      %72 = vector.load %arg8[%c0_40, %c0_41] : memref<16x1xf32, #tpu.memory_space<vmem>>, vector<16x1xf32>
      %73 = vector.shape_cast %69 : vector<16x1xf32> to vector<16x1xf32>
      %74 = vector.broadcast %73 : vector<16x1xf32> to vector<16x2xf32>
      %75 = vector.shape_cast %72 : vector<16x1xf32> to vector<16x1xf32>
      %76 = vector.broadcast %75 : vector<16x1xf32> to vector<16x2xf32>
      %77 = arith.select %71, %74, %76 : vector<16x2xi1>, vector<16x2xf32>
      %c0_42 = arith.constant 0 : index
      %c0_43 = arith.constant 0 : index
      %c0_44 = arith.constant 0 : index
      %78 = vector.load %arg6[%c0_42, %c0_43, %c0_44] : memref<1x16x2xf32, #tpu.memory_space<vmem>>, vector<1x16x2xf32>
      %79 = vector.shape_cast %78 : vector<1x16x2xf32> to vector<16x2xf32>
      %80 = vector.shape_cast %77 : vector<16x2xf32> to vector<1x16x2xf32>
      tpu.vector_store %arg6[%c0_42, %c0_43, %c0_44], %80 {strides = array<i32>} : memref<1x16x2xf32, #tpu.memory_space<vmem>>, vector<1x16x2xf32>,
    } else {
    }
    return
  }
  func.func @transform_0(%arg0: i32, %arg1: i32) -> (i32, i32, i32) {
    %c0_i32 = arith.constant 0 : i32
    %c0_i32_0 = arith.constant 0 : i32
    return %arg0, %c0_i32, %arg1 : i32, i32, i32
  }
  func.func @transform_1(%arg0: i32, %arg1: i32) -> (i32, i32) {
    %c0_i32 = arith.constant 0 : i32
    %c0_i32_0 = arith.constant 0 : i32
    %c0_i32_1 = arith.constant 0 : i32
    return %c0_i32, %c0_i32_0 : i32, i32
  }
  func.func @transform_2(%arg0: i32, %arg1: i32) -> (i32, i32) {
    %c0_i32 = arith.constant 0 : i32
    %c0_i32_0 = arith.constant 0 : i32
    %c0_i32_1 = arith.constant 0 : i32
    return %c0_i32, %c0_i32_0 : i32, i32
  }
  func.func @transform_3(%arg0: i32, %arg1: i32) -> (i32, i32, i32) {
    %c0_i32 = arith.constant 0 : i32
    %c0_i32_0 = arith.constant 0 : i32
    return %arg0, %c0_i32, %arg1 : i32, i32, i32
  }
  func.func @transform_4(%arg0: i32, %arg1: i32) -> (i32, i32, i32) {
    %c0_i32 = arith.constant 0 : i32
    %c0_i32_0 = arith.constant 0 : i32
    %c0_i32_1 = arith.constant 0 : i32
    return %arg0, %c0_i32, %c0_i32_0 : i32, i32, i32
  }
}

</mosaic_0001>

<llo_original>
// kernel: tpu_custom_call.1
$region0: #{tpu_custom_call.1}
  #allocation0 [shape = 'u32[]', space=smem, size = 0x4, offset = 0x4, fixed_abs, tag = 'smem constant byte address 0x4 - core index']
  #allocation1 [shape = 'u32[144,128]{1,0:T(1,128)}', space=vmem, size = 0x12000, scoped, tag = 'internal scratch']
  #allocation2 [shape = 'f32[16,1]{1,0:T(8,128)}', space=vmem, size = 0x2000, scoped, tag = 'scratch operand']
  #allocation3 [shape = 'f32[16,1]{1,0:T(8,128)}', space=vmem, size = 0x2000, scoped, tag = 'scratch operand']
  %s0 = inlined_call_operand.hbm [shape: f32[2,16,256], index: 0, kind: input, shape index: {}]
  %s1 = inlined_call_operand.vmem [shape: f32[16,16], index: 1, kind: input, shape index: {}]
  %s2 = inlined_call_operand.vmem [shape: f32[16,1], index: 2, kind: input, shape index: {}]
  %s3 = inlined_call_operand.hbm [shape: f32[2,16,256], index: 3, kind: output, shape index: {0}]
  %s4 = inlined_call_operand.vmem [shape: f32[2,16,2], index: 4, kind: output, shape index: {1}]
  %5 = xla_tuple %s3, %s4
  %s6 = sld [smem:[#allocation0]]
  $region65: #{tpu_custom_call.1} parent=0
    _
  %s8 = ssub.s32 1, %s6
  %s9 = scalar_select 0, %s8, %s6
  $region1: #{tpu_custom_call.1} parent=0
    #allocation4 [shape = 'u8[16384]{0}', space=vmem, size = 0x4000, scoped, tag = 'input window, operand 0']
    #allocation5 [shape = 's32[2]{0}', space=sflag, size = 0x8, scoped, tag = 'scoped memory for tpu_custom_call.1']
    #allocation6 [shape = 's32[2]{0}', space=sflag, size = 0x8, scoped, tag = 'scoped memory for tpu_custom_call.1']
    #allocation7 [shape = 'u8[16384]{0}', space=vmem, size = 0x4000, scoped, tag = 'output window, operand 0']
    %10 = vsyncpa [#allocation5], 0
    %s11 = scalar_lea.sflag [#allocation5], 1
    %12 = vsyncpa %s11, 0
    %13 = vsyncpa [#allocation6], 0
    %s14 = scalar_lea.sflag [#allocation6], 1
    %15 = vsyncpa %s14, 0
    loop: start=0, step=1, limit=6
    $region2: #{tpu_custom_call.1} parent=1 // loop_pre_header
      _
    $region3: #{tpu_custom_call.1} parent=1 // loop_header
      %s17 = sphi 0, %s21
      %p18 = scmp.ge.s32.totalorder %s17, 6
      %s24 = sphi 0, %s36
      %s25 = sphi 0, %s32
      %s26 = sphi 0, %s24
      %s27 = sphi 0, %s25
      %s28 = sphi 0, %s26
      %s29 = sphi 0, %s27
      %s41 = sphi 0, %s43
      %s44 = sphi 0, %s41
      %s45 = sphi 0, %s44
      %s61 = sphi 0, %s45
      %s65 = sphi 0, %s65
      %s67 = sphi 0, %s65
      %s68 = sphi 0, %s67
      %s82 = sphi 0, %s68
      %s86 = sphi 0, %s86
      %s88 = sphi 0, %s86
      %s89 = sphi 0, %s88
      %s103 = sphi 0, %s89
      %s111 = sphi 0, %s113
      %s114 = sphi 0, %s111
      %s115 = sphi 0, %s114
      %s131 = sphi 0, %s115
      %s137 = sphi 0, %s139
      %s140 = sphi 0, %s137
      %s141 = sphi 0, %s140
      %s157 = sphi 0, %s141
    $region4: #{tpu_custom_call.1} parent=1 // loop_header_branch
      %20 = sbr.rel (%p18) target = $region8
    $region5: #{tpu_custom_call.1} parent=1 // loop_body
      %s22 = ssub.s32 %s17, 1
      %s23 = ssub.s32 %s17, 2
      %s30 = sadd.s32 1, %s25
      %p31 = scmp.ge.s32.totalorder %s30, 2
      %s32 = scalar_select %p31, 0, %s30
      %s33 = sadd.s32 1, %s24
      %s34 = scalar_select %p31, %s33, %s24
      %p35 = scmp.ge.s32.totalorder %s34, 2
      %s36 = scalar_select %p35, 0, %s34
      %s37 = ssub.s32 %s24, %s36
      %s38 = ssub.s32 %s25, %s32
      %s39 = sor.u32 %s37, %s38
      %p40 = scmp.eq.s32.totalorder %s39, 0
      %s42 = sadd.s32 %s41, 1
      %s43 = scalar_select %p40, %s41, %s42
      %p46 = pneg %p40
      %p47 = scmp.eq.s32.totalorder %s17, 3
      %p48 = por %p46, %p47
      %p49 = scmp.ne.s32.totalorder %s41, %s44
      %p50 = scmp.eq.s32.totalorder %s17, 0
      %p51 = por %p49, %p50
      %p52 = scmp.ne.s32.totalorder %s41, %s44
      %p53 = scmp.eq.s32.totalorder %s22, 3
      %p54 = por %p52, %p53
      %p55 = scmp.ne.s32.totalorder %s44, %s45
      %p56 = scmp.eq.s32.totalorder %s22, 0
      %p57 = por %p55, %p56
      %p58 = scmp.ne.s32.totalorder %s44, %s45
      %p59 = scmp.eq.s32.totalorder %s23, 3
      %p60 = por %p58, %p59
      %p62 = scmp.ne.s32.totalorder %s45, %s61
      %p63 = scmp.eq.s32.totalorder %s23, 0
      %p64 = por %p62, %p63
      %s66 = sadd.s32 %s65, 1
      %p69 = scmp.eq.s32.totalorder %s17, 3
      %p70 = scmp.ne.s32.totalorder %s65, %s67
      %p71 = scmp.eq.s32.totalorder %s17, 0
      %p72 = por %p70, %p71
      %p73 = scmp.ne.s32.totalorder %s65, %s67
      %p74 = scmp.eq.s32.totalorder %s22, 3
      %p75 = por %p73, %p74
      %p76 = scmp.ne.s32.totalorder %s67, %s68
      %p77 = scmp.eq.s32.totalorder %s22, 0
      %p78 = por %p76, %p77
      %p79 = scmp.ne.s32.totalorder %s67, %s68
      %p80 = scmp.eq.s32.totalorder %s23, 3
      %p81 = por %p79, %p80
      %p83 = scmp.ne.s32.totalorder %s68, %s82
      %p84 = scmp.eq.s32.totalorder %s23, 0
      %p85 = por %p83, %p84
      %s87 = sadd.s32 %s86, 1
      %p90 = scmp.eq.s32.totalorder %s17, 3
      %p91 = scmp.ne.s32.totalorder %s86, %s88
      %p92 = scmp.eq.s32.totalorder %s17, 0
      %p93 = por %p91, %p92
      %p94 = scmp.ne.s32.totalorder %s86, %s88
      %p95 = scmp.eq.s32.totalorder %s22, 3
      %p96 = por %p94, %p95
      %p97 = scmp.ne.s32.totalorder %s88, %s89
      %p98 = scmp.eq.s32.totalorder %s22, 0
      %p99 = por %p97, %p98
      %p100 = scmp.ne.s32.totalorder %s88, %s89
      %p101 = scmp.eq.s32.totalorder %s23, 3
      %p102 = por %p100, %p101
      %p104 = scmp.ne.s32.totalorder %s89, %s103
      %p105 = scmp.eq.s32.totalorder %s23, 0
      %p106 = por %p104, %p105
      %s107 = ssub.s32 %s24, %s36
      %s108 = ssub.s32 %s25, %s32
      %s109 = sor.u32 %s107, %s108
      %p110 = scmp.eq.s32.totalorder %s109, 0
      %s112 = sadd.s32 %s111, 1
      %s113 = scalar_select %p110, %s111, %s112
      %p116 = pneg %p110
      %p117 = scmp.eq.s32.totalorder %s17, 3
      %p118 = por %p116, %p117
      %p119 = scmp.ne.s32.totalorder %s111, %s114
      %p120 = scmp.eq.s32.totalorder %s17, 0
      %p121 = por %p119, %p120
      %p122 = scmp.ne.s32.totalorder %s111, %s114
      %p123 = scmp.eq.s32.totalorder %s22, 3
      %p124 = por %p122, %p123
      %p125 = scmp.ne.s32.totalorder %s114, %s115
      %p126 = scmp.eq.s32.totalorder %s22, 0
      %p127 = por %p125, %p126
      %p128 = scmp.ne.s32.totalorder %s114, %s115
      %p129 = scmp.eq.s32.totalorder %s23, 3
      %p130 = por %p128, %p129
      %p132 = scmp.ne.s32.totalorder %s115, %s131
      %p133 = scmp.eq.s32.totalorder %s23, 0
      %p134 = por %p132, %p133
      %s135 = ssub.s32 %s24, %s36
      %p136 = scmp.eq.s32.totalorder %s135, 0
      %s138 = sadd.s32 %s137, 1
      %s139 = scalar_select %p136, %s137, %s138
      %p142 = pneg %p136
      %p143 = scmp.eq.s32.totalorder %s17, 3
      %p144 = por %p142, %p143
      %p145 = scmp.ne.s32.totalorder %s137, %s140
      %p146 = scmp.eq.s32.totalorder %s17, 0
      %p147 = por %p145, %p146
      %p148 = scmp.ne.s32.totalorder %s137, %s140
      %p149 = scmp.eq.s32.totalorder %s22, 3
      %p150 = por %p148, %p149
      %p151 = scmp.ne.s32.totalorder %s140, %s141
      %p152 = scmp.eq.s32.totalorder %s22, 0
      %p153 = por %p151, %p152
      %p154 = scmp.ne.s32.totalorder %s140, %s141
      %p155 = scmp.eq.s32.totalorder %s23, 3
      %p156 = por %p154, %p155
      %p158 = scmp.ne.s32.totalorder %s141, %s157
      %p159 = scmp.eq.s32.totalorder %s23, 0
      %p160 = por %p158, %p159
      %p161 = scmp.le.s32.totalorder 1, %s17
      %p162 = scmp.lt.s32.totalorder %s17, 5
      %p163 = pnand %p161, %p162
      %p164 = pneg %p163
      // Predicated region
      $region9: #{tpu_custom_call.1} parent=5 // pred_check
        _
      $region10: #{tpu_custom_call.1} parent=5 // pred_check_branch
        %166 = sbr.rel (%p163) target = $region12
      $region11: #{tpu_custom_call.1} parent=5 // pred_region
        %s167 = ssub.s32 %s17, 1
        // Predicated region
        $region13: #{tpu_custom_call.1} parent=11 // pred_check
          %p168 = pneg %p78
        $region14: #{tpu_custom_call.1} parent=11 // pred_check_branch
          %170 = sbr.rel (%p168) target = $region16
        $region15: #{tpu_custom_call.1} parent=11 // pred_region
          _
        $region16: #{tpu_custom_call.1} parent=11 // pred_fallthru
          _
        // Predicated region
        $region17: #{tpu_custom_call.1} parent=11 // pred_check
          %p171 = pneg %p99
        $region18: #{tpu_custom_call.1} parent=11 // pred_check_branch
          %173 = sbr.rel (%p171) target = $region20
        $region19: #{tpu_custom_call.1} parent=11 // pred_region
          _
        $region20: #{tpu_custom_call.1} parent=11 // pred_fallthru
          _
      $region12: #{tpu_custom_call.1} parent=5 // pred_fallthru
        _
      %p174 = scmp.lt.s32.totalorder %s17, 4
      // Predicated region
      $region21: #{tpu_custom_call.1} parent=5 // pred_check
        %p175 = pneg %p174
      $region22: #{tpu_custom_call.1} parent=5 // pred_check_branch
        %177 = sbr.rel (%p175) target = $region24
      $region23: #{tpu_custom_call.1} parent=5 // pred_region
        // Predicated region
        $region25: #{tpu_custom_call.1} parent=23 // pred_check
          %p178 = pneg %p51
        $region26: #{tpu_custom_call.1} parent=23 // pred_check_branch
          %180 = sbr.rel (%p178) target = $region28
        $region27: #{tpu_custom_call.1} parent=23 // pred_region
          %s181 = sand.u32 %s41, 1
          %s182 = scalar_lea.sflag [#allocation5], %s181
          %s183 = sand.u32 %s41, 1
          %s184 = smul.addr %s183, 16
          %s185 = scalar_lea.vmem [#allocation4], %s184
          %s187 = ssub.s32 256, 256
          %188 = vsyncadd %s182, %s187
          %s189 = smul.addr %s24, 4
          %s190 = sadd.s32 %s25, %s189
          %s191 = smul.addr %s190, 128
          %s192 = scalar_lea.hbm %s0, %s191
          %s193 = sshll.u32 %s185, 4
          %s194 = int_to_ptr.vmem [resolvable:$true] %s193
          %199 = dma.hbm_to_vmem [thread:$0]  %s192, 256, %s194, %s182, 256, 128, 8
        $region28: #{tpu_custom_call.1} parent=23 // pred_fallthru
          _
      $region24: #{tpu_custom_call.1} parent=5 // pred_fallthru
        _
      %p200 = scmp.le.s32.totalorder 1, %s17
      %p201 = scmp.lt.s32.totalorder %s17, 5
      %p202 = pnand %p200, %p201
      %p203 = pneg %p202
      // Predicated region
      $region29: #{tpu_custom_call.1} parent=5 // pred_check
        _
      $region30: #{tpu_custom_call.1} parent=5 // pred_check_branch
        %205 = sbr.rel (%p202) target = $region32
      $region31: #{tpu_custom_call.1} parent=5 // pred_region
        %s206 = ssub.s32 %s17, 1
        %s207 = sand.u32 %s44, 1
        %s208 = scalar_lea.sflag [#allocation5], %s207
        %s209 = sand.u32 %s44, 1
        %s210 = smul.addr %s209, 16
        %s211 = scalar_lea.vmem [#allocation4], %s210
        // Predicated region
        $region33: #{tpu_custom_call.1} parent=31 // pred_check
          %p212 = pneg %p57
        $region34: #{tpu_custom_call.1} parent=31 // pred_check_branch
          %214 = sbr.rel (%p212) target = $region36
        $region35: #{tpu_custom_call.1} parent=31 // pred_region
          %215 = dma.done %s208, 256
        $region36: #{tpu_custom_call.1} parent=31 // pred_fallthru
          _
        %s216 = sand.u32 %s44, 1
        %s217 = scalar_lea.sflag [#allocation5], %s216
        %s218 = sand.u32 %s44, 1
        %s219 = smul.addr %s218, 16
        %s220 = scalar_lea.vmem [#allocation4], %s219
        %p221 = pneg %p57
        %p222 = pneg %p54
        %p223 = pneg %p78
        %p224 = pneg %p75
        %p225 = pneg %p99
        %p226 = pneg %p96
        %p227 = pneg %p127
        %p228 = pneg %p124
        %s229 = sand.u32 %s114, 1
        %s230 = scalar_lea.sflag [#allocation6], %s229
        %s231 = sand.u32 %s114, 1
        %s232 = smul.addr %s231, 16
        %s233 = scalar_lea.vmem [#allocation7], %s232
        %p234 = pneg %p153
        %p235 = pneg %p150
        %p236 = scmp.lt.s32.totalorder %s26, 1
        %s237 = scalar_select %p236, %s26, 1
        %s238 = smul.addr %s237, 2
        %s239 = smul.addr %s238, 8
        %s240 = scalar_lea.vmem %s4, %s239
        %p241 = scmp.lt.s32.totalorder %s26, 1
        %s242 = scalar_select %p241, %s26, 1
        %s243 = smul.addr %s242, 2
        %s244 = smul.addr %s243, 8
        %s245 = scalar_lea.vmem %s4, %s244
        %p246 = scmp.eq.s32.totalorder %s27, 0
        // Predicated region
        $region37: #{tpu_custom_call.1} parent=31 // pred_check
          %p247 = pneg %p246
        $region38: #{tpu_custom_call.1} parent=31 // pred_check_branch
          %249 = sbr.rel (%p247) target = $region40
        $region39: #{tpu_custom_call.1} parent=31 // pred_region
          %vm250 = vcmask 7168
          %251 = vst.msk [vmem:[#allocation2] sm:$0xff] %vm250, 0.0
          %252 = vst.msk [vmem:[#allocation2 + $0x8] sm:$0xff] %vm250, 0.0
          %253 = vst.msk [vmem:[#allocation3] sm:$0xff] %vm250, -inf
          %254 = vst.msk [vmem:[#allocation3 + $0x8] sm:$0xff] %vm250, -inf
        $region40: #{tpu_custom_call.1} parent=31 // pred_fallthru
          _
        %v255 = vld [vmem:[%s211] sm:$0xff]
        %v256 = vld [vmem:[%s211 + $0x8] sm:$0xff]
        %v257 = vld [vmem:[%s1] sm:$0xff]
        %v258 = vld [vmem:[%s1 + $0x8] sm:$0xff]
        %v259 = vld [vmem:[%s2] sm:$0xff]
        %v260 = vld [vmem:[%s2 + $0x8] sm:$0xff]
        %262 = vset.pattern.permute.xlu0 0
        %263 = vperm.xlu0 %262, %v259
        %v264 = vpop.permute.xlu0 %263
        %267 = vset.pattern.permute.xlu0 0
        %268 = vperm.xlu0 %267, %v260
        %v269 = vpop.permute.xlu0 %268
        %vm271 = vcmask 130048
        %v273 = vsel %vm271, %v257, 0
        %v276 = vsel %vm271, %v258, 0
        %278 = vmatprep.subr.mxu0 0.0
        %279 = vmatpush1.msra.mxu0 0.0
        %280 = vmatprep.subr.mxu0 0.0
        %281 = vmatpush1.msra.mxu0 0.0
        %282 = vmatprep.subr.mxu0 0.0
        %283 = vmatpush1.msra.mxu0 0.0
        %284 = vmatprep.subr.mxu0 0.0
        %285 = vmatpush1.msra.mxu0 0.0
        %286 = vmatprep.subr.mxu0 0.0
        %287 = vmatpush1.msra.mxu0 0.0
        %288 = vmatprep.subr.mxu0 0.0
        %289 = vmatpush1.msra.mxu0 0.0
        %290 = vmatprep.subr.mxu0 0.0
        %291 = vmatpush1.msra.mxu0 0.0
        %292 = vmatprep.subr.mxu0 0.0
        %293 = vmatpush1.msra.mxu0 0.0
        %294 = vmatprep.subr.mxu0 0.0
        %295 = vmatpush1.msra.mxu0 0.0
        %296 = vmatprep.subr.mxu0 0.0
        %297 = vmatpush1.msra.mxu0 0.0
        %298 = vmatprep.subr.mxu0 0.0
        %299 = vmatpush1.msra.mxu0 0.0
        %300 = vmatprep.subr.mxu0 0.0
        %301 = vmatpush1.msra.mxu0 0.0
        %302 = vmatprep.subr.mxu0 0.0
        %303 = vmatpush1.msra.mxu0 0.0
        %304 = vmatprep.subr.mxu0 0.0
        %305 = vmatpush1.msra.mxu0 0.0
        %306 = vmatprep.subr.mxu0 0.0
        %307 = vmatpush1.msra.mxu0 %v256
        %308 = vmatprep.subr.mxu0 0.0
        %309 = vmatpush1.msra.mxu0 %v255
        %310 = vmatprep.subr.mxu0 0.0
        %311 = vmatpush2.msra.mxu0 0.0
        %312 = vmatprep.subr.mxu0 0.0
        %313 = vmatpush2.msra.mxu0 0.0
        %314 = vmatprep.subr.mxu0 0.0
        %315 = vmatpush2.msra.mxu0 0.0
        %316 = vmatprep.subr.mxu0 0.0
        %317 = vmatpush2.msra.mxu0 0.0
        %318 = vmatprep.subr.mxu0 0.0
        %319 = vmatpush2.msra.mxu0 0.0
        %320 = vmatprep.subr.mxu0 0.0
        %321 = vmatpush2.msra.mxu0 0.0
        %322 = vmatprep.subr.mxu0 0.0
        %323 = vmatpush2.msra.mxu0 0.0
        %324 = vmatprep.subr.mxu0 0.0
        %325 = vmatpush2.msra.mxu0 0.0
        %326 = vmatprep.subr.mxu0 0.0
        %327 = vmatpush2.msra.mxu0 0.0
        %328 = vmatprep.subr.mxu0 0.0
        %329 = vmatpush2.msra.mxu0 0.0
        %330 = vmatprep.subr.mxu0 0.0
        %331 = vmatpush2.msra.mxu0 0.0
        %332 = vmatprep.subr.mxu0 0.0
        %333 = vmatpush2.msra.mxu0 0.0
        %334 = vmatprep.subr.mxu0 0.0
        %335 = vmatpush2.msra.mxu0 0.0
        %336 = vmatprep.subr.mxu0 0.0
        %337 = vmatpush2.msra.mxu0 0.0
        %338 = vmatprep.subr.mxu0 0.0
        %339 = vmatpush2.msra.mxu0 0.0
        %340 = vmatprep.subr.mxu0 0.0
        %341 = vmatpush2.msra.mxu0 0.0
        %342 = vmatprep.mubr.f32.mxu0 0.0
        %343 = vmatmul.mubr.f32.gmra.mxu0 %v273
        %v344 = vpop.f32.mrf.mxu0
        %v345 = vadd.f32 %v264, %v344
        %v346 = vpop.f32.mrf.mxu0
        %347 = vmatprep.mubr.f32.mxu0 0.0
        %348 = vmatmul.mubr.f32.gmra.mxu0 %v276
        %v349 = vpop.f32.mrf.mxu0
        %v350 = vadd.f32 %v269, %v349
        %v351 = vpop.f32.mrf.mxu0
        %352 = vdwg.mxu0
        %v353 = vmul.f32 %v345, 0.5
        %v354 = vmul.f32 %v350, 0.5
        %v355 = vmul.f32 %v345, 0.70710677
        %v356 = vmul.f32 %v350, 0.70710677
        %v357 = vand.u32 2147483647, %v355
        %v358 = vand.u32 2147483647, %v356
        %v359 = vmul.f32 %v357, 0.3275911
        %v360 = vmul.f32 %v358, 0.3275911
        %v361 = vadd.f32 %v359, 1.0
        %v362 = vadd.f32 %v360, 1.0
        %v363 = vrcp.pop %v361
        %v364 = vmul.f32 1.0, %v363
        %v365 = vrcp.pop %v362
        %v366 = vmul.f32 1.0, %v365
        %v367 = vmul.f32 %v364, 1.0614054
        %v368 = vmul.f32 %v366, 1.0614054
        %v369 = vadd.f32 %v367, -1.4531521
        %v370 = vadd.f32 %v368, -1.4531521
        %v371 = vmul.f32 %v369, %v364
        %v372 = vmul.f32 %v370, %v366
        %v373 = vadd.f32 %v371, 1.4214138
        %v374 = vadd.f32 %v372, 1.4214138
        %v375 = vmul.f32 %v373, %v364
        %v376 = vmul.f32 %v374, %v366
        %v377 = vadd.f32 %v375, -0.28449672
        %v378 = vadd.f32 %v376, -0.28449672
        %v379 = vmul.f32 %v377, %v364
        %v380 = vmul.f32 %v378, %v366
        %v381 = vadd.f32 %v379, 0.2548296
        %v382 = vadd.f32 %v380, 0.2548296
        %v383 = vmul.f32 %v381, %v364
        %v384 = vmul.f32 %v382, %v366
        %v385 = vsub.f32 0.0, %v357
        %v386 = vsub.f32 0.0, %v358
        %v387 = vmul.f32 %v385, %v357
        %v388 = vmul.f32 %v386, %v358
        %v389 = vmul.f32 %v387, 1.442695
        %v390 = vpow.pop %v389
        %v391 = vmul.f32 %v388, 1.442695
        %v392 = vpow.pop %v391
        %v393 = vmul.f32 %v383, %v390
        %v394 = vmul.f32 %v384, %v392
        %v395 = vsub.f32 1.0, %v393
        %v396 = vsub.f32 1.0, %v394
        %vm397 = vcmp.ge.f32.partialorder %v355, 0.0
        %vm398 = vcmp.ge.f32.partialorder %v356, 0.0
        %v399 = vsub.f32 0.0, %v395
        %v400 = vsub.f32 0.0, %v396
        %v401 = vsel %vm397, %v395, %v399
        %v402 = vsel %vm398, %v396, %v400
        %v403 = vadd.f32 %v401, 1.0
        %v404 = vadd.f32 %v402, 1.0
        %v405 = vmul.f32 %v353, %v403
        %v406 = vmul.f32 %v354, %v404
        %407 = vst [vmem:[%s233] sm:$0xff] %v405
        %408 = vst [vmem:[%s233 + $0x8] sm:$0xff] %v406
        %v409 = vld [vmem:[#allocation2] sm:$0xff]
        %v410 = vld [vmem:[#allocation2 + $0x8] sm:$0xff]
        %411 = vadd.xlane.f32.xlu0 %v405
        %v412 = vpop.xlane.xlu0 %411
        %413 = vadd.xlane.f32.xlu0 %v406
        %v414 = vpop.xlane.xlu0 %413
        %v415 = vadd.f32 %v409, %v412
        %v416 = vadd.f32 %v410, %v414
        %vm417 = vcmask 7168
        %418 = vst.msk [vmem:[#allocation2] sm:$0xff] %vm417, %v415
        %419 = vst.msk [vmem:[#allocation2 + $0x8] sm:$0xff] %vm417, %v416
        %v420 = vld [vmem:[#allocation3] sm:$0xff]
        %v421 = vld [vmem:[#allocation3 + $0x8] sm:$0xff]
        %422 = vmax.xlane.f32.xlu0 %v405
        %v423 = vpop.xlane.xlu0 %422
        %424 = vmax.xlane.f32.xlu0 %v406
        %v425 = vpop.xlane.xlu0 %424
        %v426 = vmax.f32 %v420, %v423
        %v427 = vmax.f32 %v421, %v425
        %428 = vst.msk [vmem:[#allocation3] sm:$0xff] %vm417, %v426
        %429 = vst.msk [vmem:[#allocation3 + $0x8] sm:$0xff] %vm417, %v427
        %p430 = scmp.eq.s32.totalorder %s27, 1
        // Predicated region
        $region41: #{tpu_custom_call.1} parent=31 // pred_check
          %p431 = pneg %p430
        $region42: #{tpu_custom_call.1} parent=31 // pred_check_branch
          %433 = sbr.rel (%p431) target = $region44
        $region43: #{tpu_custom_call.1} parent=31 // pred_region
          %v434 = vlaneseq
          %v435 = vand.u32 %v434, 127
          %v436 = vld [vmem:[#allocation2] sm:$0xff]
          %v437 = vld [vmem:[#allocation2 + $0x8] sm:$0xff]
          %v438 = vmul.f32 %v436, 0.00390625
          %v439 = vmul.f32 %v437, 0.00390625
          %vm440 = vcmp.eq.s32.totalorder %v435, 0
          %v441 = vld [vmem:[#allocation3] sm:$0xff]
          %v442 = vld [vmem:[#allocation3 + $0x8] sm:$0xff]
          %444 = vset.pattern.permute.xlu0 0
          %445 = vperm.xlu0 %444, %v438
          %v446 = vpop.permute.xlu0 %445
          %449 = vset.pattern.permute.xlu0 0
          %450 = vperm.xlu0 %449, %v439
          %v451 = vpop.permute.xlu0 %450
          %454 = vset.pattern.permute.xlu0 0
          %455 = vperm.xlu0 %454, %v441
          %v456 = vpop.permute.xlu0 %455
          %459 = vset.pattern.permute.xlu0 0
          %460 = vperm.xlu0 %459, %v442
          %v461 = vpop.permute.xlu0 %460
          %v463 = vsel %vm440, %v446, %v456
          %v464 = vsel %vm440, %v451, %v461
          %vm465 = vcmask 15360
          %466 = vst.msk [vmem:[%s245] sm:$0xff] %vm465, %v463
          %467 = vst.msk [vmem:[%s245 + $0x8] sm:$0xff] %vm465, %v464
        $region44: #{tpu_custom_call.1} parent=31 // pred_fallthru
          _
        %s468 = sand.u32 %s114, 1
        %s469 = scalar_lea.sflag [#allocation6], %s468
        %s470 = sand.u32 %s114, 1
        %s471 = smul.addr %s470, 16
        %s472 = scalar_lea.vmem [#allocation7], %s471
        %p473 = scmp.lt.s32.totalorder %s26, 1
        %s474 = scalar_select %p473, %s26, 1
        %s475 = smul.addr %s474, 2
        %s476 = smul.addr %s475, 8
        %s477 = scalar_lea.vmem %s4, %s476
        // Predicated region
        $region45: #{tpu_custom_call.1} parent=31 // pred_check
          %p478 = pneg %p124
        $region46: #{tpu_custom_call.1} parent=31 // pred_check_branch
          %480 = sbr.rel (%p478) target = $region48
        $region47: #{tpu_custom_call.1} parent=31 // pred_region
          %s482 = ssub.s32 256, 256
          %483 = vsyncadd %s469, %s482
          %s484 = smul.addr %s26, 4
          %s485 = sadd.s32 %s27, %s484
          %s486 = smul.addr %s485, 128
          %s487 = scalar_lea.hbm %s3, %s486
          %s488 = sshll.u32 %s472, 4
          %s489 = int_to_ptr.vmem [resolvable:$true] %s488
          %494 = dma.vmem_to_hbm [thread:$0]  %s489, 256, %s487, %s469, 128, 256, 8
        $region48: #{tpu_custom_call.1} parent=31 // pred_fallthru
          _
        // Predicated region
        $region49: #{tpu_custom_call.1} parent=31 // pred_check
          %p495 = pneg %p150
        $region50: #{tpu_custom_call.1} parent=31 // pred_check_branch
          %497 = sbr.rel (%p495) target = $region52
        $region51: #{tpu_custom_call.1} parent=31 // pred_region
          _
        $region52: #{tpu_custom_call.1} parent=31 // pred_fallthru
          _
      $region32: #{tpu_custom_call.1} parent=5 // pred_fallthru
        _
      %p498 = scmp.le.s32.totalorder 2, %s17
      // Predicated region
      $region53: #{tpu_custom_call.1} parent=5 // pred_check
        %p499 = pneg %p498
      $region54: #{tpu_custom_call.1} parent=5 // pred_check_branch
        %501 = sbr.rel (%p499) target = $region56
      $region55: #{tpu_custom_call.1} parent=5 // pred_region
        %s502 = ssub.s32 %s17, 2
        // Predicated region
        $region57: #{tpu_custom_call.1} parent=55 // pred_check
          %p503 = pneg %p130
        $region58: #{tpu_custom_call.1} parent=55 // pred_check_branch
          %505 = sbr.rel (%p503) target = $region60
        $region59: #{tpu_custom_call.1} parent=55 // pred_region
          %s506 = sand.u32 %s115, 1
          %s507 = scalar_lea.sflag [#allocation6], %s506
          %s508 = sand.u32 %s115, 1
          %s509 = smul.addr %s508, 16
          %s510 = scalar_lea.vmem [#allocation7], %s509
          %511 = dma.done %s507, 256
        $region60: #{tpu_custom_call.1} parent=55 // pred_fallthru
          _
        // Predicated region
        $region61: #{tpu_custom_call.1} parent=55 // pred_check
          %p512 = pneg %p156
        $region62: #{tpu_custom_call.1} parent=55 // pred_check_branch
          %514 = sbr.rel (%p512) target = $region64
        $region63: #{tpu_custom_call.1} parent=55 // pred_region
          %p515 = scmp.lt.s32.totalorder %s28, 1
          %s516 = scalar_select %p515, %s28, 1
          %s517 = smul.addr %s516, 2
          %s518 = smul.addr %s517, 8
          %s519 = scalar_lea.vmem %s4, %s518
        $region64: #{tpu_custom_call.1} parent=55 // pred_fallthru
          _
      $region56: #{tpu_custom_call.1} parent=5 // pred_fallthru
        _
    $region6: #{tpu_custom_call.1} parent=1 // loop_footer
      %s21 = sadd.s32 1, %s17
    $region7: #{tpu_custom_call.1} parent=1 // loop_footer_branch
      %16 = sbr.rel target = $region3
    $region8: #{tpu_custom_call.1} parent=1 // loop_exit
      _
    %520 = vsyncpa [#allocation5], 1
    %s521 = scalar_lea.sflag [#allocation5], 1
    %522 = vsyncpa %s521, 1
    %523 = vsyncpa [#allocation6], 1
    %s524 = scalar_lea.sflag [#allocation6], 1
    %525 = vsyncpa %s524, 1

</llo_original>
